<compile_context>
chip_gen: v7x
topology: tpu7x:2x2x1
jax: 0.10.0
libtpu: 0.0.40
codegen_flags: <defaults>
</compile_context>

<pallas_src>
import math

import jax
import jax.numpy as jnp
from jax import lax
from jax.experimental import pallas as pl
from jax.experimental.pallas import tpu as pltpu

# Module-level constants from the PyTorch source.
LATENT_DIM = 128
PROJ_DROPOUT = 0.0          # dropout is identity at inference / p=0
LINEAR_PROJECTION = False   # exercise the full Projection block
LN_EPS = 1e-5               # nn.LayerNorm default eps
NORM_EPS = 1e-12            # F.normalize default eps

# MXU-native operand dtype.  Accumulation is always f32.
MATMUL_DTYPE = jnp.bfloat16


# ------------------ shared math (used by kernels AND matched reference) ------------------

def _mm(a, b):
    """MXU matmul: bf16 operands, f32 accumulation."""
    return jnp.dot(a.astype(MATMUL_DTYPE), b.astype(MATMUL_DTYPE),
                   preferred_element_type=jnp.float32)


def _gelu_exact(x):
    # PyTorch nn.GELU() default = exact erf formulation (kept for semantic
    # fidelity; a tanh-approx would move work from VALU to EUP but changes numerics).
    return 0.5 * x * (1.0 + lax.erf(x * 0.7071067811865476))


def _projection_chain(x, w_enc, w_proj, w_fc, b_enc, b_proj, b_fc):
    """encoder Linear + Projection.proj -> GELU -> Projection.fc -> dropout(0) -> +residual."""
    h = _mm(x, w_enc) + b_enc
    projected = _mm(h, w_proj) + b_proj
    g = _gelu_exact(projected)
    f = _mm(g, w_fc) + b_fc
    return f + projected                      # dropout(p=0) is identity


def _layer_norm(r, gamma, beta):
    """Single-pass LayerNorm (biased variance), gamma folded into the rsqrt scale."""
    d = r.shape[-1]
    s1 = jnp.sum(r, axis=-1, keepdims=True)
    s2 = jnp.sum(r * r, axis=-1, keepdims=True)
    mean = s1 * (1.0 / d)
    var = s2 * (1.0 / d) - mean * mean
    scale = gamma * lax.rsqrt(var + LN_EPS)
    return r * scale + (beta - mean * scale)


def _scaled_logits(zx, zy, logit_scale):
    """getLogits: F.normalize both sides + exp(logit_scale), divide-free.

    F.normalize(v) = v / max(||v||, eps) = v * min(rsqrt(||v||^2), 1/eps).
    zy is pre-scaled by its inverse norm (cheap (B,128) multiply, avoids a
    (B,1)->(1,B) relayout at tiny B); zx's inverse norm and exp(scale) are
    applied as one rank-1 row scale after the matmul.
    """
    inv_x = jnp.minimum(lax.rsqrt(jnp.sum(zx * zx, axis=-1, keepdims=True)), 1.0 / NORM_EPS)
    inv_y = jnp.minimum(lax.rsqrt(jnp.sum(zy * zy, axis=-1, keepdims=True)), 1.0 / NORM_EPS)
    yn = zy * inv_y
    # Contract the shared last dims directly — equivalent to zx @ yn.T but the
    # MXU consumes yn without an XLU transpose.
    raw = lax.dot_general(zx.astype(MATMUL_DTYPE), yn.astype(MATMUL_DTYPE),
                          dimension_numbers=(((1,), (1,)), ((), ())),
                          preferred_element_type=jnp.float32)
    return raw * (inv_x * jnp.exp(logit_scale))   # exp computed exactly once per call


# ----------------------------------- Pallas kernels -----------------------------------

def _blockdiag_kernel(scale_ref, xy_ref, we_ref, wp_ref, wf_ref, vecs_ref, o_ref):
    """v6e/v7x path: branches A and B fused block-diagonally into 256-wide matmuls.

    vecs rows (8, 2*LATENT): [b_enc | b_proj | b_fc | gamma | beta | 0 | 0 | 0],
    each row = branch-A half (zero-padded to 128) followed by branch-B half.
    """
    L = LATENT_DIM
    vecs = vecs_ref[...]
    r = _projection_chain(xy_ref[...], we_ref[...], wp_ref[...], wf_ref[...],
                          vecs[0:1, :], vecs[1:2, :], vecs[2:3, :])      # (B, 2L)
    gamma, beta = vecs[3:4, :], vecs[4:5, :]
    # LayerNorm per 128-lane half (tile-aligned slices -> no relayout).
    zx = _layer_norm(r[:, :L], gamma[:, :L], beta[:, :L])
    zy = _layer_norm(r[:, L:], gamma[:, L:], beta[:, L:])
    o_ref[...] = _scaled_logits(zx, zy, scale_ref[0])


def _per_branch_kernel(scale_ref, x_ref, y_ref,
                       weA_ref, wpA_ref, wfA_ref, vA_ref,
                       weB_ref, wpB_ref, wfB_ref, vB_ref, o_ref):
    """v5e/older path: 128x128 MXU, keep the two branches as separate 128-wide matmuls."""
    vA, vB = vA_ref[...], vB_ref[...]
    rA = _projection_chain(x_ref[...], weA_ref[...], wpA_ref[...], wfA_ref[...],
                           vA[0:1, :], vA[1:2, :], vA[2:3, :])
    rB = _projection_chain(y_ref[...], weB_ref[...], wpB_ref[...], wfB_ref[...],
                           vB[0:1, :], vB[1:2, :], vB[2:3, :])
    zx = _layer_norm(rA, vA[3:4, :], vA[4:5, :])
    zy = _layer_norm(rB, vB[3:4, :], vB[4:5, :])
    o_ref[...] = _scaled_logits(zx, zy, scale_ref[0])


# ------------------------------------- wrapper -------------------------------------

_VMEM = pl.BlockSpec(memory_space=pltpu.MemorySpace.VMEM)
_SMEM = pl.BlockSpec(memory_space=pltpu.MemorySpace.SMEM)


def prefer_fused_branches():
    """Block-diagonal A+B fusion only pays off on 256-wide MXUs (v6e/v7x and newer)."""
    try:
        kind = jax.devices()[0].device_kind.lower()
    except Exception:
        return True
    return not any(g in kind for g in ("v2", "v3", "v4", "v5"))


def contrastive_forward(x, y, packed, fuse_branches):
    """Single pallas_call for the whole ContrastiveModel.forward."""
    B, L = x.shape[0], LATENT_DIM
    # Zero-pad raw input dims to 128 lanes (zero lanes contribute exactly 0) and
    # cast to the MXU operand dtype once, outside the kernel.
    xp = jnp.pad(x, ((0, 0), (0, L - x.shape[1]))).astype(MATMUL_DTYPE)
    yp = jnp.pad(y, ((0, 0), (0, L - y.shape[1]))).astype(MATMUL_DTYPE)

    if fuse_branches:
        xy = jnp.concatenate([xp, yp], axis=-1)                       # (B, 2L)
        kernel = _blockdiag_kernel
        args = (packed["logit_scale"], xy,
                packed["w_enc"], packed["w_proj"], packed["w_fc"], packed["vecs"])
    else:
        pA, pB = packed["A"], packed["B"]
        kernel = _per_branch_kernel
        args = (packed["logit_scale"], xp, yp,
                pA["w_enc"], pA["w_proj"], pA["w_fc"], pA["vecs"],
                pB["w_enc"], pB["w_proj"], pB["w_fc"], pB["vecs"])

    # Grid-less at B=8 (no work to split).  When B grows: add a leading batch
    # grid axis marked "parallel" (2nd TensorCore on v7x), keep weight index_maps
    # constant, budget tiles against 64 MiB VMEM on v7x, and tile the (B,B)
    # output with a >=128-lane last-dim tile for unmasked stores.
    return pl.pallas_call(
        kernel,
        out_shape=jax.ShapeDtypeStruct((B, B), jnp.float32),
        in_specs=[_SMEM] + [_VMEM] * (len(args) - 1),
        out_specs=_VMEM,
    )(*args)


# -------------------------------- params & packing --------------------------------

def _init_linear(key, fan_in, fan_out):
    bound = 1.0 / math.sqrt(fan_in)
    kw, kb = jax.random.split(key)
    w = jax.random.uniform(kw, (fan_in, fan_out), jnp.float32, -bound, bound)
    b = jax.random.uniform(kb, (1, fan_out), jnp.float32, -bound, bound)
    return w, b


def _init_branch(key, in_dim, d_model, latent):
    k0, k1, k2 = jax.random.split(key, 3)
    w_enc, b_enc = _init_linear(k0, in_dim, d_model)
    w_proj, b_proj = _init_linear(k1, d_model, latent)
    w_fc, b_fc = _init_linear(k2, latent, latent)
    return dict(w_enc=w_enc, b_enc=b_enc, w_proj=w_proj, b_proj=b_proj,
                w_fc=w_fc, b_fc=b_fc,
                gamma=jnp.ones((1, latent), jnp.float32),
                beta=jnp.zeros((1, latent), jnp.float32))


def _pad_to(w, rows, cols):
    return jnp.pad(w, ((0, rows - w.shape[0]), (0, cols - w.shape[1])))


def _pad_vec(v, n):
    v = v.reshape(-1)
    return jnp.pad(v, (0, n - v.shape[0]))


def _block_diag(a, b):
    top = jnp.concatenate([a, jnp.zeros((a.shape[0], b.shape[1]), a.dtype)], axis=1)
    bot = jnp.concatenate([jnp.zeros((b.shape[0], a.shape[1]), b.dtype), b], axis=1)
    return jnp.concatenate([top, bot], axis=0)


def _pack_branch_padded(p):
    """Zero-pad weights to 128x128 (f32) and gather the five 1-row vectors."""
    L = LATENT_DIM
    w_enc = _pad_to(p["w_enc"], L, L)
    w_proj = _pad_to(p["w_proj"], L, L)
    w_fc = p["w_fc"]
    rows = [_pad_vec(p[k], L) for k in ("b_enc", "b_proj", "b_fc", "gamma", "beta")]
    return w_enc, w_proj, w_fc, rows


def pack_per_branch_params(params):
    """v5e layout: per-branch padded bf16 weights + one (8,128) f32 vector tile each."""
    def one(p):
        we, wp, wf, rows = _pack_branch_padded(p)
        vecs = jnp.stack(rows + [jnp.zeros((LATENT_DIM,), jnp.float32)] * 3)
        return dict(w_enc=we.astype(MATMUL_DTYPE), w_proj=wp.astype(MATMUL_DTYPE),
                    w_fc=wf.astype(MATMUL_DTYPE), vecs=vecs)
    return dict(A=one(params["A"]), B=one(params["B"]),
                logit_scale=params["logit_scale"])


def pack_blockdiag_params(params):
    """v6e/v7x layout: block-diagonal 256x256 bf16 weights + one (8,256) f32 vector tile."""
    weA, wpA, wfA, rowsA = _pack_branch_padded(params["A"])
    weB, wpB, wfB, rowsB = _pack_branch_padded(params["B"])
    vecs = jnp.stack([jnp.concatenate([a, b]) for a, b in zip(rowsA, rowsB)]
                     + [jnp.zeros((2 * LATENT_DIM,), jnp.float32)] * 3)
    return dict(w_enc=_block_diag(weA, weB).astype(MATMUL_DTYPE),
                w_proj=_block_diag(wpA, wpB).astype(MATMUL_DTYPE),
                w_fc=_block_diag(wfA, wfB).astype(MATMUL_DTYPE),
                vecs=vecs, logit_scale=params["logit_scale"])


# ------------------------------------ references ------------------------------------

def _matched_reference(x, y, params):
    """Same math as the kernel (bf16 MXU operands, fused LN, divide-free normalize),
    expressed in plain JAX: an apples-to-apples check of the Pallas mechanics."""
    def branch(inp, p):
        r = _projection_chain(inp, p["w_enc"], p["w_proj"], p["w_fc"],
                              p["b_enc"], p["b_proj"], p["b_fc"])
        return _layer_norm(r, p["gamma"], p["beta"])
    zx = branch(x, params["A"])
    zy = branch(y, params["B"])
    return _scaled_logits(zx, zy, params["logit_scale"][0])


def _ref_forward_f32(x, y, params):
    """PyTorch-faithful f32 reference (two-pass LN, divide normalize, f32 matmuls)."""
    def branch(inp, p):
        h = inp @ p["w_enc"] + p["b_enc"]
        projected = h @ p["w_proj"] + p["b_proj"]
        g = _gelu_exact(projected)
        f = g @ p["w_fc"] + p["b_fc"]
        r = f + projected
        mean = r.mean(-1, keepdims=True)
        var = ((r - mean) ** 2).mean(-1, keepdims=True)
        return (r - mean) / jnp.sqrt(var + LN_EPS) * p["gamma"] + p["beta"]
    zx, zy = branch(x, params["A"]), branch(y, params["B"])
    xn = zx / jnp.maximum(jnp.linalg.norm(zx, axis=-1, keepdims=True), NORM_EPS)
    yn = zy / jnp.maximum(jnp.linalg.norm(zy, axis=-1, keepdims=True), NORM_EPS)
    return xn @ yn.T * jnp.exp(params["logit_scale"][0])


# --------------------------------------- main ---------------------------------------

if __name__ == "__main__":
    B = 8
    IN_X, IN_Y = 32, 48             # raw input feature dims
    D_MODEL_A, D_MODEL_B = 64, 96   # encA.d_model / encB.d_model

    key = jax.random.PRNGKey(0)
    kx, ky, ka, kb = jax.random.split(key, 4)
    x = jax.random.normal(kx, (B, IN_X), jnp.float32)
    y = jax.random.normal(ky, (B, IN_Y), jnp.float32)

    params = dict(
        A=_init_branch(ka, IN_X, D_MODEL_A, LATENT_DIM),
        B=_init_branch(kb, IN_Y, D_MODEL_B, LATENT_DIM),
        logit_scale=jnp.full((1,), math.log(1.0 / 0.07), jnp.float32),
    )

    fuse = prefer_fused_branches()
    packed = pack_blockdiag_params(params) if fuse else pack_per_branch_params(params)

    logits = jax.block_until_ready(contrastive_forward(x, y, packed, fuse))
    assert logits.shape == (B, B)

    # Tight check vs a reference that mirrors the kernel numerics exactly.
    ref_matched = _matched_reference(x, y, params)
    assert jnp.allclose(logits, ref_matched, atol=1e-2, rtol=1e-3), \
        "mismatch vs bf16-matched reference"

    # Looser sanity check vs the f32 PyTorch-faithful reference (bf16 MXU drift).
    ref_f32 = _ref_forward_f32(x, y, params)
    assert jnp.allclose(logits, ref_f32, atol=2e-1, rtol=2e-2), \
        "drift vs f32 reference too large"

    print("KERNEL_OK")
</pallas_src>

<mosaic_0001>
module attributes {stable_mosaic.version = 11 : i64} {
  func.func @_blockdiag_kernel(%arg0: memref<1xf32, #tpu.memory_space<smem>>, %arg1: memref<8x256xbf16, #tpu.memory_space<vmem>>, %arg2: memref<256x256xbf16, #tpu.memory_space<vmem>>, %arg3: memref<256x256xbf16, #tpu.memory_space<vmem>>, %arg4: memref<256x256xbf16, #tpu.memory_space<vmem>>, %arg5: memref<8x256xf32, #tpu.memory_space<vmem>>, %arg6: memref<8x8xf32, #tpu.memory_space<vmem>>) attributes {dimension_semantics = [], scalar_prefetch = 0 : i64, scratch_operands = 0 : i64, tpu.core_type = #tpu.core_type<tc>} {
    %c0 = arith.constant 0 : index
    %c0_0 = arith.constant 0 : index
    %0 = vector.load %arg5[%c0, %c0_0] : memref<8x256xf32, #tpu.memory_space<vmem>>, vector<8x256xf32>
    %c0_1 = arith.constant 0 : index
    %c0_2 = arith.constant 0 : index
    %1 = vector.load %arg1[%c0_1, %c0_2] : memref<8x256xbf16, #tpu.memory_space<vmem>>, vector<8x256xbf16>
    %c0_3 = arith.constant 0 : index
    %c0_4 = arith.constant 0 : index
    %2 = vector.load %arg2[%c0_3, %c0_4] : memref<256x256xbf16, #tpu.memory_space<vmem>>, vector<256x256xbf16>
    %c0_5 = arith.constant 0 : index
    %c0_6 = arith.constant 0 : index
    %3 = vector.load %arg3[%c0_5, %c0_6] : memref<256x256xbf16, #tpu.memory_space<vmem>>, vector<256x256xbf16>
    %c0_7 = arith.constant 0 : index
    %c0_8 = arith.constant 0 : index
    %4 = vector.load %arg4[%c0_7, %c0_8] : memref<256x256xbf16, #tpu.memory_space<vmem>>, vector<256x256xbf16>
    %5 = vector.extract_strided_slice %0 {offsets = [0, 0], sizes = [1, 256], strides = [1, 1]} : vector<8x256xf32> to vector<1x256xf32>
    %6 = vector.extract_strided_slice %0 {offsets = [1, 0], sizes = [1, 256], strides = [1, 1]} : vector<8x256xf32> to vector<1x256xf32>
    %7 = vector.extract_strided_slice %0 {offsets = [2, 0], sizes = [1, 256], strides = [1, 1]} : vector<8x256xf32> to vector<1x256xf32>
    %cst = arith.constant dense<0.000000e+00> : vector<8x256xf32>
    %8 = tpu.matmul %1, %2, %cst {dimension_numbers = #tpu.dot_dimension_numbers<[1], [0], [0], [1], [0, 0, 1, 1], [], []>} : vector<8x256xbf16>, vector<256x256xbf16>, vector<8x256xf32> -> vector<8x256xf32>
    %9 = vector.broadcast %5 : vector<1x256xf32> to vector<8x256xf32>
    %10 = arith.addf %8, %9 : vector<8x256xf32>
    %11 = arith.truncf %10 : vector<8x256xf32> to vector<8x256xbf16>
    %cst_9 = arith.constant dense<0.000000e+00> : vector<8x256xf32>
    %12 = tpu.matmul %11, %3, %cst_9 {dimension_numbers = #tpu.dot_dimension_numbers<[1], [0], [0], [1], [0, 0, 1, 1], [], []>} : vector<8x256xbf16>, vector<256x256xbf16>, vector<8x256xf32> -> vector<8x256xf32>
    %13 = vector.broadcast %6 : vector<1x256xf32> to vector<8x256xf32>
    %14 = arith.addf %12, %13 : vector<8x256xf32>
    %cst_10 = arith.constant 5.000000e-01 : f32
    %15 = vector.broadcast %cst_10 : f32 to vector<8x256xf32>
    %16 = arith.mulf %15, %14 : vector<8x256xf32>
    %cst_11 = arith.constant 0.707106769 : f32
    %17 = vector.broadcast %cst_11 : f32 to vector<8x256xf32>
    %18 = arith.mulf %14, %17 : vector<8x256xf32>
    %19 = math.erf %18 : vector<8x256xf32>
    %cst_12 = arith.constant 1.000000e+00 : f32
    %20 = vector.broadcast %cst_12 : f32 to vector<8x256xf32>
    %21 = arith.addf %20, %19 : vector<8x256xf32>
    %22 = arith.mulf %16, %21 : vector<8x256xf32>
    %23 = arith.truncf %22 : vector<8x256xf32> to vector<8x256xbf16>
    %cst_13 = arith.constant dense<0.000000e+00> : vector<8x256xf32>
    %24 = tpu.matmul %23, %4, %cst_13 {dimension_numbers = #tpu.dot_dimension_numbers<[1], [0], [0], [1], [0, 0, 1, 1], [], []>} : vector<8x256xbf16>, vector<256x256xbf16>, vector<8x256xf32> -> vector<8x256xf32>
    %25 = vector.broadcast %7 : vector<1x256xf32> to vector<8x256xf32>
    %26 = arith.addf %24, %25 : vector<8x256xf32>
    %27 = arith.addf %26, %14 : vector<8x256xf32>
    %28 = vector.extract_strided_slice %0 {offsets = [3, 0], sizes = [1, 256], strides = [1, 1]} : vector<8x256xf32> to vector<1x256xf32>
    %29 = vector.extract_strided_slice %0 {offsets = [4, 0], sizes = [1, 256], strides = [1, 1]} : vector<8x256xf32> to vector<1x256xf32>
    %30 = vector.extract_strided_slice %27 {offsets = [0, 0], sizes = [8, 128], strides = [1, 1]} : vector<8x256xf32> to vector<8x128xf32>
    %31 = vector.extract_strided_slice %28 {offsets = [0, 0], sizes = [1, 128], strides = [1, 1]} : vector<1x256xf32> to vector<1x128xf32>
    %32 = vector.extract_strided_slice %29 {offsets = [0, 0], sizes = [1, 128], strides = [1, 1]} : vector<1x256xf32> to vector<1x128xf32>
    %cst_14 = arith.constant dense<0.000000e+00> : vector<8xf32>
    %33 = vector.multi_reduction <add>, %30, %cst_14 [1] : vector<8x128xf32> to vector<8xf32>
    %34 = vector.shape_cast %33 : vector<8xf32> to vector<8x1xf32>
    %35 = arith.mulf %30, %30 : vector<8x128xf32>
    %cst_15 = arith.constant dense<0.000000e+00> : vector<8xf32>
    %36 = vector.multi_reduction <add>, %35, %cst_15 [1] : vector<8x128xf32> to vector<8xf32>
    %37 = vector.shape_cast %36 : vector<8xf32> to vector<8x1xf32>
    %cst_16 = arith.constant 7.812500e-03 : f32
    %38 = vector.broadcast %cst_16 : f32 to vector<8x1xf32>
    %39 = arith.mulf %34, %38 : vector<8x1xf32>
    %cst_17 = arith.constant 7.812500e-03 : f32
    %40 = vector.broadcast %cst_17 : f32 to vector<8x1xf32>
    %41 = arith.mulf %37, %40 : vector<8x1xf32>
    %42 = arith.mulf %39, %39 : vector<8x1xf32>
    %43 = arith.subf %41, %42 : vector<8x1xf32>
    %cst_18 = arith.constant 9.99999974E-6 : f32
    %44 = vector.broadcast %cst_18 : f32 to vector<8x1xf32>
    %45 = arith.addf %43, %44 : vector<8x1xf32>
    %46 = math.rsqrt %45 : vector<8x1xf32>
    %47 = vector.broadcast %31 : vector<1x128xf32> to vector<8x128xf32>
    %48 = vector.broadcast %46 : vector<8x1xf32> to vector<8x128xf32>
    %49 = arith.mulf %47, %48 : vector<8x128xf32>
    %50 = arith.mulf %30, %49 : vector<8x128xf32>
    %51 = vector.broadcast %39 : vector<8x1xf32> to vector<8x128xf32>
    %52 = arith.mulf %51, %49 : vector<8x128xf32>
    %53 = vector.broadcast %32 : vector<1x128xf32> to vector<8x128xf32>
    %54 = arith.subf %53, %52 : vector<8x128xf32>
    %55 = arith.addf %50, %54 : vector<8x128xf32>
    %56 = vector.extract_strided_slice %27 {offsets = [0, 128], sizes = [8, 128], strides = [1, 1]} : vector<8x256xf32> to vector<8x128xf32>
    %57 = vector.extract_strided_slice %28 {offsets = [0, 128], sizes = [1, 128], strides = [1, 1]} : vector<1x256xf32> to vector<1x128xf32>
    %58 = vector.extract_strided_slice %29 {offsets = [0, 128], sizes = [1, 128], strides = [1, 1]} : vector<1x256xf32> to vector<1x128xf32>
    %cst_19 = arith.constant dense<0.000000e+00> : vector<8xf32>
    %59 = vector.multi_reduction <add>, %56, %cst_19 [1] : vector<8x128xf32> to vector<8xf32>
    %60 = vector.shape_cast %59 : vector<8xf32> to vector<8x1xf32>
    %61 = arith.mulf %56, %56 : vector<8x128xf32>
    %cst_20 = arith.constant dense<0.000000e+00> : vector<8xf32>
    %62 = vector.multi_reduction <add>, %61, %cst_20 [1] : vector<8x128xf32> to vector<8xf32>
    %63 = vector.shape_cast %62 : vector<8xf32> to vector<8x1xf32>
    %cst_21 = arith.constant 7.812500e-03 : f32
    %64 = vector.broadcast %cst_21 : f32 to vector<8x1xf32>
    %65 = arith.mulf %60, %64 : vector<8x1xf32>
    %cst_22 = arith.constant 7.812500e-03 : f32
    %66 = vector.broadcast %cst_22 : f32 to vector<8x1xf32>
    %67 = arith.mulf %63, %66 : vector<8x1xf32>
    %68 = arith.mulf %65, %65 : vector<8x1xf32>
    %69 = arith.subf %67, %68 : vector<8x1xf32>
    %cst_23 = arith.constant 9.99999974E-6 : f32
    %70 = vector.broadcast %cst_23 : f32 to vector<8x1xf32>
    %71 = arith.addf %69, %70 : vector<8x1xf32>
    %72 = math.rsqrt %71 : vector<8x1xf32>
    %73 = vector.broadcast %57 : vector<1x128xf32> to vector<8x128xf32>
    %74 = vector.broadcast %72 : vector<8x1xf32> to vector<8x128xf32>
    %75 = arith.mulf %73, %74 : vector<8x128xf32>
    %76 = arith.mulf %56, %75 : vector<8x128xf32>
    %77 = vector.broadcast %65 : vector<8x1xf32> to vector<8x128xf32>
    %78 = arith.mulf %77, %75 : vector<8x128xf32>
    %79 = vector.broadcast %58 : vector<1x128xf32> to vector<8x128xf32>
    %80 = arith.subf %79, %78 : vector<8x128xf32>
    %81 = arith.addf %76, %80 : vector<8x128xf32>
    %c0_24 = arith.constant 0 : index
    %82 = memref.load %arg0[%c0_24] : memref<1xf32, #tpu.memory_space<smem>>
    %83 = arith.mulf %55, %55 : vector<8x128xf32>
    %cst_25 = arith.constant dense<0.000000e+00> : vector<8xf32>
    %84 = vector.multi_reduction <add>, %83, %cst_25 [1] : vector<8x128xf32> to vector<8xf32>
    %85 = vector.shape_cast %84 : vector<8xf32> to vector<8x1xf32>
    %86 = math.rsqrt %85 : vector<8x1xf32>
    %cst_26 = arith.constant 9.99999995E+11 : f32
    %87 = vector.broadcast %cst_26 : f32 to vector<8x1xf32>
    %88 = arith.minimumf %86, %87 : vector<8x1xf32>
    %89 = arith.mulf %81, %81 : vector<8x128xf32>
    %cst_27 = arith.constant dense<0.000000e+00> : vector<8xf32>
    %90 = vector.multi_reduction <add>, %89, %cst_27 [1] : vector<8x128xf32> to vector<8xf32>
    %91 = vector.shape_cast %90 : vector<8xf32> to vector<8x1xf32>
    %92 = math.rsqrt %91 : vector<8x1xf32>
    %cst_28 = arith.constant 9.99999995E+11 : f32
    %93 = vector.broadcast %cst_28 : f32 to vector<8x1xf32>
    %94 = arith.minimumf %92, %93 : vector<8x1xf32>
    %95 = vector.broadcast %94 : vector<8x1xf32> to vector<8x128xf32>
    %96 = arith.mulf %81, %95 : vector<8x128xf32>
    %97 = arith.truncf %55 : vector<8x128xf32> to vector<8x128xbf16>
    %98 = arith.truncf %96 : vector<8x128xf32> to vector<8x128xbf16>
    %cst_29 = arith.constant dense<0.000000e+00> : vector<8x8xf32>
    %99 = tpu.matmul %97, %98, %cst_29 {dimension_numbers = #tpu.dot_dimension_numbers<[1], [1], [0], [0], [0, 0, 1, 0], [], []>} : vector<8x128xbf16>, vector<8x128xbf16>, vector<8x8xf32> -> vector<8x8xf32>
    %100 = math.exp %82 : f32
    %101 = vector.broadcast %100 : f32 to vector<8x1xf32>
    %102 = arith.mulf %88, %101 : vector<8x1xf32>
    %103 = vector.broadcast %102 : vector<8x1xf32> to vector<8x8xf32>
    %104 = arith.mulf %99, %103 : vector<8x8xf32>
    %c0_30 = arith.constant 0 : index
    %c0_31 = arith.constant 0 : index
    %105 = vector.load %arg6[%c0_30, %c0_31] : memref<8x8xf32, #tpu.memory_space<vmem>>, vector<8x8xf32>
    tpu.vector_store %arg6[%c0_30, %c0_31], %104 {strides = array<i32>} : memref<8x8xf32, #tpu.memory_space<vmem>>, vector<8x8xf32>,
    return
  }
}

</mosaic_0001>

<llo_original>
// kernel: tpu_custom_call.1
$region0: #{tpu_custom_call.1}
  #allocation0 [shape = 'u32[]', space=smem, size = 0x4, offset = 0x4, fixed_abs, tag = 'smem constant byte address 0x4 - core index']
  #allocation1 [shape = 'u32[144,128]{1,0:T(1,128)}', space=vmem, size = 0x12000, scoped, tag = 'internal scratch']
  #allocation2 [shape = 'f32[1]{0:T(128)S(6)}', space=smem, size = 0x200, scoped, tag = 'scoped memory for tpu_custom_call.1']
  %s0 = inlined_call_operand.<no memory space> [shape: f32[1], index: 0, kind: input, shape index: {}]
  %s1 = inlined_call_operand.hbm [shape: bf16[8,256], index: 1, kind: input, shape index: {}]
  %s2 = inlined_call_operand.hbm [shape: bf16[256,256], index: 2, kind: input, shape index: {}]
  %s3 = inlined_call_operand.hbm [shape: bf16[256,256], index: 3, kind: input, shape index: {}]
  %s4 = inlined_call_operand.hbm [shape: bf16[256,256], index: 4, kind: input, shape index: {}]
  %s5 = inlined_call_operand.vmem [shape: f32[8,256], index: 5, kind: input, shape index: {}]
  %s6 = inlined_call_operand.hbm [shape: f32[8,8], index: 6, kind: output, shape index: {}]
  %s7 = sld [smem:[#allocation0]]
  $region50: #{tpu_custom_call.1} parent=0
    _
  %s9 = ssub.s32 1, %s7
  %s10 = scalar_select 0, %s9, %s7
  %11 = sst [smem:[#allocation2]] %s0
  $region1: #{tpu_custom_call.1} parent=0
    #allocation3 [shape = 'u8[4096]{0}', space=vmem, size = 0x1000, scoped, tag = 'input window, operand 1, single buffered']
    #allocation4 [shape = 's32[1]{0}', space=sflag, size = 0x4, scoped, tag = 'scoped memory for tpu_custom_call.1']
    #allocation5 [shape = 's32[1]{0}', space=sflag, size = 0x4, scoped, tag = 'scoped memory for tpu_custom_call.1']
    #allocation6 [shape = 'u8[131072]{0}', space=vmem, size = 0x20000, scoped, tag = 'input window, operand 2, single buffered']
    #allocation7 [shape = 's32[1]{0}', space=sflag, size = 0x4, scoped, tag = 'scoped memory for tpu_custom_call.1']
    #allocation8 [shape = 'u8[131072]{0}', space=vmem, size = 0x20000, scoped, tag = 'input window, operand 3, single buffered']
    #allocation9 [shape = 'u8[131072]{0}', space=vmem, size = 0x20000, scoped, tag = 'input window, operand 4, single buffered']
    #allocation10 [shape = 's32[1]{0}', space=sflag, size = 0x4, scoped, tag = 'scoped memory for tpu_custom_call.1']
    #allocation11 [shape = 'u8[4096]{0}', space=vmem, size = 0x1000, scoped, tag = 'output window, operand 0, single buffered']
    %12 = vsyncpa [#allocation4], 0
    %13 = vsyncpa [#allocation7], 0
    %14 = vsyncpa [#allocation10], 0
    %15 = vsyncpa [#allocation5], 0
    // Predicated region
    $region2: #{tpu_custom_call.1} parent=1 // pred_check
      _
    $region3: #{tpu_custom_call.1} parent=1 // pred_check_branch
      %17 = sbr.rel (0) target = $region5
    $region4: #{tpu_custom_call.1} parent=1 // pred_region
      _
    $region5: #{tpu_custom_call.1} parent=1 // pred_fallthru
      _
    // Predicated region
    $region6: #{tpu_custom_call.1} parent=1 // pred_check
      _
    $region7: #{tpu_custom_call.1} parent=1 // pred_check_branch
      %19 = sbr.rel (0) target = $region9
    $region8: #{tpu_custom_call.1} parent=1 // pred_region
      %s21 = ssub.s32 128, 128
      %22 = vsyncadd [#allocation4], %s21
      %s24 = sshll.u32 [#allocation3], 4
      %s25 = int_to_ptr.vmem [resolvable:$true] %s24
      %27 = dma.hbm_to_vmem [thread:$0]  %s1, 128, %s25, [#allocation4]
    $region9: #{tpu_custom_call.1} parent=1 // pred_fallthru
      _
    // Predicated region
    $region10: #{tpu_custom_call.1} parent=1 // pred_check
      _
    $region11: #{tpu_custom_call.1} parent=1 // pred_check_branch
      %29 = sbr.rel (0) target = $region13
    $region12: #{tpu_custom_call.1} parent=1 // pred_region
      %s31 = ssub.s32 4096, 4096
      %32 = vsyncadd [#allocation7], %s31
      %s33 = sshll.u32 [#allocation6], 4
      %s34 = int_to_ptr.vmem [resolvable:$true] %s33
      %39 = dma.hbm_to_vmem [thread:$0]  %s2, 4096, %s34, [#allocation7], 128, 128, 8
    $region13: #{tpu_custom_call.1} parent=1 // pred_fallthru
      _
    // Predicated region
    $region14: #{tpu_custom_call.1} parent=1 // pred_check
      _
    $region15: #{tpu_custom_call.1} parent=1 // pred_check_branch
      %41 = sbr.rel (0) target = $region17
    $region16: #{tpu_custom_call.1} parent=1 // pred_region
      %s43 = ssub.s32 4096, 4096
      %44 = vsyncadd [#allocation7], %s43
      %s45 = sshll.u32 [#allocation8], 4
      %s46 = int_to_ptr.vmem [resolvable:$true] %s45
      %51 = dma.hbm_to_vmem [thread:$0]  %s3, 4096, %s46, [#allocation7], 128, 128, 8
    $region17: #{tpu_custom_call.1} parent=1 // pred_fallthru
      _
    // Predicated region
    $region18: #{tpu_custom_call.1} parent=1 // pred_check
      _
    $region19: #{tpu_custom_call.1} parent=1 // pred_check_branch
      %53 = sbr.rel (0) target = $region21
    $region20: #{tpu_custom_call.1} parent=1 // pred_region
      %s55 = ssub.s32 4096, 4096
      %56 = vsyncadd [#allocation10], %s55
      %s57 = sshll.u32 [#allocation9], 4
      %s58 = int_to_ptr.vmem [resolvable:$true] %s57
      %63 = dma.hbm_to_vmem [thread:$0]  %s4, 4096, %s58, [#allocation10], 128, 128, 8
    $region21: #{tpu_custom_call.1} parent=1 // pred_fallthru
      _
    // Predicated region
    $region22: #{tpu_custom_call.1} parent=1 // pred_check
      _
    $region23: #{tpu_custom_call.1} parent=1 // pred_check_branch
      %65 = sbr.rel (0) target = $region25
    $region24: #{tpu_custom_call.1} parent=1 // pred_region
      _
    $region25: #{tpu_custom_call.1} parent=1 // pred_fallthru
      _
    // Predicated region
    $region26: #{tpu_custom_call.1} parent=1 // pred_check
      _
    $region27: #{tpu_custom_call.1} parent=1 // pred_check_branch
      %67 = sbr.rel (0) target = $region29
    $region28: #{tpu_custom_call.1} parent=1 // pred_region
      %68 = dma.done [#allocation4], 128
    $region29: #{tpu_custom_call.1} parent=1 // pred_fallthru
      _
    // Predicated region
    $region30: #{tpu_custom_call.1} parent=1 // pred_check
      _
    $region31: #{tpu_custom_call.1} parent=1 // pred_check_branch
      %70 = sbr.rel (0) target = $region33
    $region32: #{tpu_custom_call.1} parent=1 // pred_region
      %71 = dma.done [#allocation7], 4096
    $region33: #{tpu_custom_call.1} parent=1 // pred_fallthru
      _
    // Predicated region
    $region34: #{tpu_custom_call.1} parent=1 // pred_check
      _
    $region35: #{tpu_custom_call.1} parent=1 // pred_check_branch
      %73 = sbr.rel (0) target = $region37
    $region36: #{tpu_custom_call.1} parent=1 // pred_region
      %74 = dma.done [#allocation7], 4096
    $region37: #{tpu_custom_call.1} parent=1 // pred_fallthru
      _
    // Predicated region
    $region38: #{tpu_custom_call.1} parent=1 // pred_check
      _
    $region39: #{tpu_custom_call.1} parent=1 // pred_check_branch
      %76 = sbr.rel (0) target = $region41
    $region40: #{tpu_custom_call.1} parent=1 // pred_region
      %77 = dma.done [#allocation10], 4096
    $region41: #{tpu_custom_call.1} parent=1 // pred_fallthru
      _
    %v79 = vld [vmem:[%s5] sm:$0xff]
    %v80 = vld [vmem:[%s5 + $0x8] sm:$0xff]
    %v81 = vld [vmem:[#allocation3] sm:$0xff]
    %v82 = vld [vmem:[#allocation6] sm:$0xff]
    %v83 = vld [vmem:[#allocation6 + $0x8] sm:$0xff]
    %v84 = vld [vmem:[#allocation6 + $0x10] sm:$0xff]
    %v85 = vld [vmem:[#allocation6 + $0x18] sm:$0xff]
    %v86 = vld [vmem:[#allocation6 + $0x20] sm:$0xff]
    %v87 = vld [vmem:[#allocation6 + $0x28] sm:$0xff]
    %v88 = vld [vmem:[#allocation6 + $0x30] sm:$0xff]
    %v89 = vld [vmem:[#allocation6 + $0x38] sm:$0xff]
    %v90 = vld [vmem:[#allocation6 + $0x40] sm:$0xff]
    %v91 = vld [vmem:[#allocation6 + $0x48] sm:$0xff]
    %v92 = vld [vmem:[#allocation6 + $0x50] sm:$0xff]
    %v93 = vld [vmem:[#allocation6 + $0x58] sm:$0xff]
    %v94 = vld [vmem:[#allocation6 + $0x60] sm:$0xff]
    %v95 = vld [vmem:[#allocation6 + $0x68] sm:$0xff]
    %v96 = vld [vmem:[#allocation6 + $0x70] sm:$0xff]
    %v97 = vld [vmem:[#allocation6 + $0x78] sm:$0xff]
    %v98 = vld [vmem:[#allocation6 + $0x80] sm:$0xff]
    %v99 = vld [vmem:[#allocation6 + $0x88] sm:$0xff]
    %v100 = vld [vmem:[#allocation6 + $0x90] sm:$0xff]
    %v101 = vld [vmem:[#allocation6 + $0x98] sm:$0xff]
    %v102 = vld [vmem:[#allocation6 + $0xa0] sm:$0xff]
    %v103 = vld [vmem:[#allocation6 + $0xa8] sm:$0xff]
    %v104 = vld [vmem:[#allocation6 + $0xb0] sm:$0xff]
    %v105 = vld [vmem:[#allocation6 + $0xb8] sm:$0xff]
    %v106 = vld [vmem:[#allocation6 + $0xc0] sm:$0xff]
    %v107 = vld [vmem:[#allocation6 + $0xc8] sm:$0xff]
    %v108 = vld [vmem:[#allocation6 + $0xd0] sm:$0xff]
    %v109 = vld [vmem:[#allocation6 + $0xd8] sm:$0xff]
    %v110 = vld [vmem:[#allocation6 + $0xe0] sm:$0xff]
    %v111 = vld [vmem:[#allocation6 + $0xe8] sm:$0xff]
    %v112 = vld [vmem:[#allocation6 + $0xf0] sm:$0xff]
    %v113 = vld [vmem:[#allocation6 + $0xf8] sm:$0xff]
    %v114 = vld [vmem:[#allocation8] sm:$0xff]
    %v115 = vld [vmem:[#allocation8 + $0x8] sm:$0xff]
    %v116 = vld [vmem:[#allocation8 + $0x10] sm:$0xff]
    %v117 = vld [vmem:[#allocation8 + $0x18] sm:$0xff]
    %v118 = vld [vmem:[#allocation8 + $0x20] sm:$0xff]
    %v119 = vld [vmem:[#allocation8 + $0x28] sm:$0xff]
    %v120 = vld [vmem:[#allocation8 + $0x30] sm:$0xff]
    %v121 = vld [vmem:[#allocation8 + $0x38] sm:$0xff]
    %v122 = vld [vmem:[#allocation8 + $0x40] sm:$0xff]
    %v123 = vld [vmem:[#allocation8 + $0x48] sm:$0xff]
    %v124 = vld [vmem:[#allocation8 + $0x50] sm:$0xff]
    %v125 = vld [vmem:[#allocation8 + $0x58] sm:$0xff]
    %v126 = vld [vmem:[#allocation8 + $0x60] sm:$0xff]
    %v127 = vld [vmem:[#allocation8 + $0x68] sm:$0xff]
    %v128 = vld [vmem:[#allocation8 + $0x70] sm:$0xff]
    %v129 = vld [vmem:[#allocation8 + $0x78] sm:$0xff]
    %v130 = vld [vmem:[#allocation8 + $0x80] sm:$0xff]
    %v131 = vld [vmem:[#allocation8 + $0x88] sm:$0xff]
    %v132 = vld [vmem:[#allocation8 + $0x90] sm:$0xff]
    %v133 = vld [vmem:[#allocation8 + $0x98] sm:$0xff]
    %v134 = vld [vmem:[#allocation8 + $0xa0] sm:$0xff]
    %v135 = vld [vmem:[#allocation8 + $0xa8] sm:$0xff]
    %v136 = vld [vmem:[#allocation8 + $0xb0] sm:$0xff]
    %v137 = vld [vmem:[#allocation8 + $0xb8] sm:$0xff]
    %v138 = vld [vmem:[#allocation8 + $0xc0] sm:$0xff]
    %v139 = vld [vmem:[#allocation8 + $0xc8] sm:$0xff]
    %v140 = vld [vmem:[#allocation8 + $0xd0] sm:$0xff]
    %v141 = vld [vmem:[#allocation8 + $0xd8] sm:$0xff]
    %v142 = vld [vmem:[#allocation8 + $0xe0] sm:$0xff]
    %v143 = vld [vmem:[#allocation8 + $0xe8] sm:$0xff]
    %v144 = vld [vmem:[#allocation8 + $0xf0] sm:$0xff]
    %v145 = vld [vmem:[#allocation8 + $0xf8] sm:$0xff]
    %v146 = vld [vmem:[#allocation9] sm:$0xff]
    %v147 = vld [vmem:[#allocation9 + $0x8] sm:$0xff]
    %v148 = vld [vmem:[#allocation9 + $0x10] sm:$0xff]
    %v149 = vld [vmem:[#allocation9 + $0x18] sm:$0xff]
    %v150 = vld [vmem:[#allocation9 + $0x20] sm:$0xff]
    %v151 = vld [vmem:[#allocation9 + $0x28] sm:$0xff]
    %v152 = vld [vmem:[#allocation9 + $0x30] sm:$0xff]
    %v153 = vld [vmem:[#allocation9 + $0x38] sm:$0xff]
    %v154 = vld [vmem:[#allocation9 + $0x40] sm:$0xff]
    %v155 = vld [vmem:[#allocation9 + $0x48] sm:$0xff]
    %v156 = vld [vmem:[#allocation9 + $0x50] sm:$0xff]
    %v157 = vld [vmem:[#allocation9 + $0x58] sm:$0xff]
    %v158 = vld [vmem:[#allocation9 + $0x60] sm:$0xff]
    %v159 = vld [vmem:[#allocation9 + $0x68] sm:$0xff]
    %v160 = vld [vmem:[#allocation9 + $0x70] sm:$0xff]
    %v161 = vld [vmem:[#allocation9 + $0x78] sm:$0xff]
    %v162 = vld [vmem:[#allocation9 + $0x80] sm:$0xff]
    %v163 = vld [vmem:[#allocation9 + $0x88] sm:$0xff]
    %v164 = vld [vmem:[#allocation9 + $0x90] sm:$0xff]
    %v165 = vld [vmem:[#allocation9 + $0x98] sm:$0xff]
    %v166 = vld [vmem:[#allocation9 + $0xa0] sm:$0xff]
    %v167 = vld [vmem:[#allocation9 + $0xa8] sm:$0xff]
    %v168 = vld [vmem:[#allocation9 + $0xb0] sm:$0xff]
    %v169 = vld [vmem:[#allocation9 + $0xb8] sm:$0xff]
    %v170 = vld [vmem:[#allocation9 + $0xc0] sm:$0xff]
    %v171 = vld [vmem:[#allocation9 + $0xc8] sm:$0xff]
    %v172 = vld [vmem:[#allocation9 + $0xd0] sm:$0xff]
    %v173 = vld [vmem:[#allocation9 + $0xd8] sm:$0xff]
    %v174 = vld [vmem:[#allocation9 + $0xe0] sm:$0xff]
    %v175 = vld [vmem:[#allocation9 + $0xe8] sm:$0xff]
    %v176 = vld [vmem:[#allocation9 + $0xf0] sm:$0xff]
    %v177 = vld [vmem:[#allocation9 + $0xf8] sm:$0xff]
    %v178 = vlaneseq
    %v179 = vshrl.u32 %v178, 7
    %v180 = vsub.s32 0, %v179
    %v181 = vrot.slane %v79, %v180
    %v182 = vlaneseq
    %v183 = vshrl.u32 %v182, 7
    %v184 = vsub.s32 0, %v183
    %v185 = vrot.slane %v80, %v184
    %v187 = vunpack.c.l.b16 %v81
    %v188 = vunpack.c.h.b16 %v81
    %v189 = vpack.c.b16 %v187, %v187
    %v190 = vpack.c.b16 %v188, %v188
    %v225 = vunpack.c.l.b16 %v82
    %v226 = vunpack.c.h.b16 %v82
    %v227 = vunpack.c.l.b16 %v83
    %v228 = vunpack.c.h.b16 %v83
    %v229 = vunpack.c.l.b16 %v84
    %v230 = vunpack.c.h.b16 %v84
    %v231 = vunpack.c.l.b16 %v85
    %v232 = vunpack.c.h.b16 %v85
    %v233 = vunpack.c.l.b16 %v86
    %v234 = vunpack.c.h.b16 %v86
    %v235 = vunpack.c.l.b16 %v87
    %v236 = vunpack.c.h.b16 %v87
    %v237 = vunpack.c.l.b16 %v88
    %v238 = vunpack.c.h.b16 %v88
    %v239 = vunpack.c.l.b16 %v89
    %v240 = vunpack.c.h.b16 %v89
    %v241 = vunpack.c.l.b16 %v90
    %v242 = vunpack.c.h.b16 %v90
    %v243 = vunpack.c.l.b16 %v91
    %v244 = vunpack.c.h.b16 %v91
    %v245 = vunpack.c.l.b16 %v92
    %v246 = vunpack.c.h.b16 %v92
    %v247 = vunpack.c.l.b16 %v93
    %v248 = vunpack.c.h.b16 %v93
    %v249 = vunpack.c.l.b16 %v94
    %v250 = vunpack.c.h.b16 %v94
    %v251 = vunpack.c.l.b16 %v95
    %v252 = vunpack.c.h.b16 %v95
    %v253 = vunpack.c.l.b16 %v96
    %v254 = vunpack.c.h.b16 %v96
    %v255 = vunpack.c.l.b16 %v97
    %v256 = vunpack.c.h.b16 %v97
    %v257 = vunpack.c.l.b16 %v98
    %v258 = vunpack.c.h.b16 %v98
    %v259 = vunpack.c.l.b16 %v99
    %v260 = vunpack.c.h.b16 %v99
    %v261 = vunpack.c.l.b16 %v100
    %v262 = vunpack.c.h.b16 %v100
    %v263 = vunpack.c.l.b16 %v101
    %v264 = vunpack.c.h.b16 %v101
    %v265 = vunpack.c.l.b16 %v102
    %v266 = vunpack.c.h.b16 %v102
    %v267 = vunpack.c.l.b16 %v103
    %v268 = vunpack.c.h.b16 %v103
    %v269 = vunpack.c.l.b16 %v104
    %v270 = vunpack.c.h.b16 %v104
    %v271 = vunpack.c.l.b16 %v105
    %v272 = vunpack.c.h.b16 %v105
    %v273 = vunpack.c.l.b16 %v106
    %v274 = vunpack.c.h.b16 %v106
    %v275 = vunpack.c.l.b16 %v107
    %v276 = vunpack.c.h.b16 %v107
    %v277 = vunpack.c.l.b16 %v108
    %v278 = vunpack.c.h.b16 %v108
    %v279 = vunpack.c.l.b16 %v109
    %v280 = vunpack.c.h.b16 %v109
    %v281 = vunpack.c.l.b16 %v110
    %v282 = vunpack.c.h.b16 %v110
    %v283 = vunpack.c.l.b16 %v111
    %v284 = vunpack.c.h.b16 %v111
    %v285 = vunpack.c.l.b16 %v112
    %v286 = vunpack.c.h.b16 %v112
    %v287 = vunpack.c.l.b16 %v113
    %v288 = vunpack.c.h.b16 %v113
    %v289 = vpack.c.b16 %v227, %v225
    %v290 = vpack.c.b16 %v228, %v226
    %v291 = vpack.c.b16 %v231, %v229
    %v292 = vpack.c.b16 %v232, %v230
    %v293 = vpack.c.b16 %v235, %v233
    %v294 = vpack.c.b16 %v236, %v234
    %v295 = vpack.c.b16 %v239, %v237
    %v296 = vpack.c.b16 %v240, %v238
    %v297 = vpack.c.b16 %v243, %v241
    %v298 = vpack.c.b16 %v244, %v242
    %v299 = vpack.c.b16 %v247, %v245
    %v300 = vpack.c.b16 %v248, %v246
    %v301 = vpack.c.b16 %v251, %v249
    %v302 = vpack.c.b16 %v252, %v250
    %v303 = vpack.c.b16 %v255, %v253
    %v304 = vpack.c.b16 %v256, %v254
    %v305 = vpack.c.b16 %v259, %v257
    %v306 = vpack.c.b16 %v260, %v258
    %v307 = vpack.c.b16 %v263, %v261
    %v308 = vpack.c.b16 %v264, %v262
    %v309 = vpack.c.b16 %v267, %v265
    %v310 = vpack.c.b16 %v268, %v266
    %v311 = vpack.c.b16 %v271, %v269
    %v312 = vpack.c.b16 %v272, %v270
    %v313 = vpack.c.b16 %v275, %v273
    %v314 = vpack.c.b16 %v276, %v274
    %v315 = vpack.c.b16 %v279, %v277
    %v316 = vpack.c.b16 %v280, %v278
    %v317 = vpack.c.b16 %v283, %v281
    %v318 = vpack.c.b16 %v284, %v282
    %v319 = vpack.c.b16 %v287, %v285
    %v320 = vpack.c.b16 %v288, %v286
    %353 = vmatprep.subr.bf16.mxu0 %v290
    %354 = vmatpush1.bf16.msra.mxu0 %v289
    %355 = vmatprep.subr.bf16.mxu0 %v292
    %356 = vmatpush1.bf16.msra.mxu0 %v291
    %357 = vmatprep.subr.bf16.mxu0 %v294
    %358 = vmatpush1.bf16.msra.mxu0 %v293
    %359 = vmatprep.subr.bf16.mxu0 %v296
    %360 = vmatpush1.bf16.msra.mxu0 %v295
    %361 = vmatprep.subr.bf16.mxu0 %v298
    %362 = vmatpush1.bf16.msra.mxu0 %v297
    %363 = vmatprep.subr.bf16.mxu0 %v300
    %364 = vmatpush1.bf16.msra.mxu0 %v299
    %365 = vmatprep.subr.bf16.mxu0 %v302
    %366 = vmatpush1.bf16.msra.mxu0 %v301
    %367 = vmatprep.subr.bf16.mxu0 %v304
    %368 = vmatpush1.bf16.msra.mxu0 %v303
    %369 = vmatprep.subr.bf16.mxu0 %v306
    %370 = vmatpush1.bf16.msra.mxu0 %v305
    %371 = vmatprep.subr.bf16.mxu0 %v308
    %372 = vmatpush1.bf16.msra.mxu0 %v307
    %373 = vmatprep.subr.bf16.mxu0 %v310
    %374 = vmatpush1.bf16.msra.mxu0 %v309
    %375 = vmatprep.subr.bf16.mxu0 %v312
    %376 = vmatpush1.bf16.msra.mxu0 %v311
    %377 = vmatprep.subr.bf16.mxu0 %v314
    %378 = vmatpush1.bf16.msra.mxu0 %v313
    %379 = vmatprep.subr.bf16.mxu0 %v316
    %380 = vmatpush1.bf16.msra.mxu0 %v315
    %381 = vmatprep.subr.bf16.mxu0 %v318
    %382 = vmatpush1.bf16.msra.mxu0 %v317
    %383 = vmatprep.subr.bf16.mxu0 %v320
    %384 = vmatpush1.bf16.msra.mxu0 %v319
    %385 = vmatprep.mubr.bf16.mxu0 %v190
    %386 = vmatmul.mubr.bf16.gmra.mrb[0].mxu0 %v189
    %v387 = vpop.f32.mrb[0].mxu0
    %v388 = vadd.f32 %v181, %v387
    %v389 = vpop.f32.mrb[0].mxu0
    %v390 = vadd.f32 %v185, %v389
    %v391 = vpop.f32.mrb[0].mxu0
    %v392 = vpop.f32.mrb[0].mxu0
    %393 = vdwg.mxu0
    %v394 = vpack.c.bf16 %v388, %v388
    %v395 = vpack.c.bf16 %v390, %v390
    %v396 = vlaneseq
    %v397 = vshrl.u32 %v396, 7
    %v398 = vsub.s32 1, %v397
    %v399 = vrot.slane %v79, %v398
    %v400 = vlaneseq
    %v401 = vshrl.u32 %v400, 7
    %v402 = vsub.s32 1, %v401
    %v403 = vrot.slane %v80, %v402
    %v436 = vunpack.c.l.b16 %v114
    %v437 = vunpack.c.h.b16 %v114
    %v438 = vunpack.c.l.b16 %v115
    %v439 = vunpack.c.h.b16 %v115
    %v440 = vunpack.c.l.b16 %v116
    %v441 = vunpack.c.h.b16 %v116
    %v442 = vunpack.c.l.b16 %v117
    %v443 = vunpack.c.h.b16 %v117
    %v444 = vunpack.c.l.b16 %v118
    %v445 = vunpack.c.h.b16 %v118
    %v446 = vunpack.c.l.b16 %v119
    %v447 = vunpack.c.h.b16 %v119
    %v448 = vunpack.c.l.b16 %v120
    %v449 = vunpack.c.h.b16 %v120
    %v450 = vunpack.c.l.b16 %v121
    %v451 = vunpack.c.h.b16 %v121
    %v452 = vunpack.c.l.b16 %v122
    %v453 = vunpack.c.h.b16 %v122
    %v454 = vunpack.c.l.b16 %v123
    %v455 = vunpack.c.h.b16 %v123
    %v456 = vunpack.c.l.b16 %v124
    %v457 = vunpack.c.h.b16 %v124
    %v458 = vunpack.c.l.b16 %v125
    %v459 = vunpack.c.h.b16 %v125
    %v460 = vunpack.c.l.b16 %v126
    %v461 = vunpack.c.h.b16 %v126
    %v462 = vunpack.c.l.b16 %v127
    %v463 = vunpack.c.h.b16 %v127
    %v464 = vunpack.c.l.b16 %v128
    %v465 = vunpack.c.h.b16 %v128
    %v466 = vunpack.c.l.b16 %v129
    %v467 = vunpack.c.h.b16 %v129
    %v468 = vunpack.c.l.b16 %v130
    %v469 = vunpack.c.h.b16 %v130
    %v470 = vunpack.c.l.b16 %v131
    %v471 = vunpack.c.h.b16 %v131
    %v472 = vunpack.c.l.b16 %v132
    %v473 = vunpack.c.h.b16 %v132
    %v474 = vunpack.c.l.b16 %v133
    %v475 = vunpack.c.h.b16 %v133
    %v476 = vunpack.c.l.b16 %v134
    %v477 = vunpack.c.h.b16 %v134
    %v478 = vunpack.c.l.b16 %v135
    %v479 = vunpack.c.h.b16 %v135
    %v480 = vunpack.c.l.b16 %v136
    %v481 = vunpack.c.h.b16 %v136
    %v482 = vunpack.c.l.b16 %v137
    %v483 = vunpack.c.h.b16 %v137
    %v484 = vunpack.c.l.b16 %v138
    %v485 = vunpack.c.h.b16 %v138
    %v486 = vunpack.c.l.b16 %v139
    %v487 = vunpack.c.h.b16 %v139
    %v488 = vunpack.c.l.b16 %v140
    %v489 = vunpack.c.h.b16 %v140
    %v490 = vunpack.c.l.b16 %v141
    %v491 = vunpack.c.h.b16 %v141
    %v492 = vunpack.c.l.b16 %v142
    %v493 = vunpack.c.h.b16 %v142
    %v494 = vunpack.c.l.b16 %v143
    %v495 = vunpack.c.h.b16 %v143
    %v496 = vunpack.c.l.b16 %v144
    %v497 = vunpack.c.h.b16 %v144
    %v498 = vunpack.c.l.b16 %v145
    %v499 = vunpack.c.h.b16 %v145
    %v500 = vpack.c.b16 %v438, %v436
    %v501 = vpack.c.b16 %v439, %v437
    %v502 = vpack.c.b16 %v442, %v440
    %v503 = vpack.c.b16 %v443, %v441
    %v504 = vpack.c.b16 %v446, %v444
    %v505 = vpack.c.b16 %v447, %v445
    %v506 = vpack.c.b16 %v450, %v448
    %v507 = vpack.c.b16 %v451, %v449
    %v508 = vpack.c.b16 %v454, %v452
    %v509 = vpack.c.b16 %v455, %v453
    %v510 = vpack.c.b16 %v458, %v456
    %v511 = vpack.c.b16 %v459, %v457
    %v512 = vpack.c.b16 %v462, %v460
    %v513 = vpack.c.b16 %v463, %v461
    %v514 = vpack.c.b16 %v466, %v464
    %v515 = vpack.c.b16 %v467, %v465
    %v516 = vpack.c.b16 %v470, %v468
    %v517 = vpack.c.b16 %v471, %v469
    %v518 = vpack.c.b16 %v474, %v472
    %v519 = vpack.c.b16 %v475, %v473
    %v520 = vpack.c.b16 %v478, %v476
    %v521 = vpack.c.b16 %v479, %v477
    %v522 = vpack.c.b16 %v482, %v480
    %v523 = vpack.c.b16 %v483, %v481
    %v524 = vpack.c.b16 %v486, %v484
    %v525 = vpack.c.b16 %v487, %v485
    %v526 = vpack.c.b16 %v490, %v488
    %v527 = vpack.c.b16 %v491, %v489
    %v528 = vpack.c.b16 %v494, %v492
    %v529 = vpack.c.b16 %v495, %v493
    %v530 = vpack.c.b16 %v498, %v496
    %v531 = vpack.c.b16 %v499, %v497
    %564 = vmatprep.subr.bf16.mxu0 %v501
    %565 = vmatpush1.bf16.msra.mxu0 %v500
    %566 = vmatprep.subr.bf16.mxu0 %v503
    %567 = vmatpush1.bf16.msra.mxu0 %v502
    %568 = vmatprep.subr.bf16.mxu0 %v505
    %569 = vmatpush1.bf16.msra.mxu0 %v504
    %570 = vmatprep.subr.bf16.mxu0 %v507
    %571 = vmatpush1.bf16.msra.mxu0 %v506
    %572 = vmatprep.subr.bf16.mxu0 %v509
    %573 = vmatpush1.bf16.msra.mxu0 %v508
    %574 = vmatprep.subr.bf16.mxu0 %v511
    %575 = vmatpush1.bf16.msra.mxu0 %v510
    %576 = vmatprep.subr.bf16.mxu0 %v513
    %577 = vmatpush1.bf16.msra.mxu0 %v512
    %578 = vmatprep.subr.bf16.mxu0 %v515
    %579 = vmatpush1.bf16.msra.mxu0 %v514
    %580 = vmatprep.subr.bf16.mxu0 %v517
    %581 = vmatpush1.bf16.msra.mxu0 %v516
    %582 = vmatprep.subr.bf16.mxu0 %v519
    %583 = vmatpush1.bf16.msra.mxu0 %v518
    %584 = vmatprep.subr.bf16.mxu0 %v521
    %585 = vmatpush1.bf16.msra.mxu0 %v520
    %586 = vmatprep.subr.bf16.mxu0 %v523
    %587 = vmatpush1.bf16.msra.mxu0 %v522
    %588 = vmatprep.subr.bf16.mxu0 %v525
    %589 = vmatpush1.bf16.msra.mxu0 %v524
    %590 = vmatprep.subr.bf16.mxu0 %v527
    %591 = vmatpush1.bf16.msra.mxu0 %v526
    %592 = vmatprep.subr.bf16.mxu0 %v529
    %593 = vmatpush1.bf16.msra.mxu0 %v528
    %594 = vmatprep.subr.bf16.mxu0 %v531
    %595 = vmatpush1.bf16.msra.mxu0 %v530
    %596 = vmatprep.mubr.bf16.mxu0 %v395
    %597 = vmatmul.mubr.bf16.gmra.mrb[0].mxu0 %v394
    %v598 = vpop.f32.mrb[0].mxu0
    %v599 = vadd.f32 %v399, %v598
    %v600 = vpop.f32.mrb[0].mxu0
    %v601 = vadd.f32 %v403, %v600
    %v602 = vpop.f32.mrb[0].mxu0
    %v603 = vpop.f32.mrb[0].mxu0
    %604 = vdwg.mxu0
    %v605 = vmul.f32 %v599, 0.5
    %v606 = vmul.f32 %v601, 0.5
    %v607 = vmul.f32 %v599, 0.70710677
    %v608 = vmul.f32 %v601, 0.70710677
    %v609 = verf.f32.pop %v607
    %v610 = verf.f32.pop %v608
    %v611 = vadd.f32 %v609, 1.0
    %v612 = vadd.f32 %v610, 1.0
    %v613 = vmul.f32 %v605, %v611
    %v614 = vmul.f32 %v606, %v612
    %v615 = vpack.c.bf16 %v613, %v613
    %v616 = vpack.c.bf16 %v614, %v614
    %v617 = vlaneseq
    %v618 = vshrl.u32 %v617, 7
    %v619 = vsub.s32 2, %v618
    %v620 = vrot.slane %v79, %v619
    %v621 = vlaneseq
    %v622 = vshrl.u32 %v621, 7
    %v623 = vsub.s32 2, %v622
    %v624 = vrot.slane %v80, %v623
    %v657 = vunpack.c.l.b16 %v146
    %v658 = vunpack.c.h.b16 %v146
    %v659 = vunpack.c.l.b16 %v147
    %v660 = vunpack.c.h.b16 %v147
    %v661 = vunpack.c.l.b16 %v148
    %v662 = vunpack.c.h.b16 %v148
    %v663 = vunpack.c.l.b16 %v149
    %v664 = vunpack.c.h.b16 %v149
    %v665 = vunpack.c.l.b16 %v150
    %v666 = vunpack.c.h.b16 %v150
    %v667 = vunpack.c.l.b16 %v151
    %v668 = vunpack.c.h.b16 %v151
    %v669 = vunpack.c.l.b16 %v152
    %v670 = vunpack.c.h.b16 %v152
    %v671 = vunpack.c.l.b16 %v153
    %v672 = vunpack.c.h.b16 %v153
    %v673 = vunpack.c.l.b16 %v154
    %v674 = vunpack.c.h.b16 %v154
    %v675 = vunpack.c.l.b16 %v155
    %v676 = vunpack.c.h.b16 %v155
    %v677 = vunpack.c.l.b16 %v156
    %v678 = vunpack.c.h.b16 %v156
    %v679 = vunpack.c.l.b16 %v157
    %v680 = vunpack.c.h.b16 %v157
    %v681 = vunpack.c.l.b16 %v158
    %v682 = vunpack.c.h.b16 %v158
    %v683 = vunpack.c.l.b16 %v159
    %v684 = vunpack.c.h.b16 %v159
    %v685 = vunpack.c.l.b16 %v160
    %v686 = vunpack.c.h.b16 %v160
    %v687 = vunpack.c.l.b16 %v161
    %v688 = vunpack.c.h.b16 %v161
    %v689 = vunpack.c.l.b16 %v162
    %v690 = vunpack.c.h.b16 %v162
    %v691 = vunpack.c.l.b16 %v163
    %v692 = vunpack.c.h.b16 %v163
    %v693 = vunpack.c.l.b16 %v164
    %v694 = vunpack.c.h.b16 %v164
    %v695 = vunpack.c.l.b16 %v165
    %v696 = vunpack.c.h.b16 %v165
    %v697 = vunpack.c.l.b16 %v166
    %v698 = vunpack.c.h.b16 %v166
    %v699 = vunpack.c.l.b16 %v167
    %v700 = vunpack.c.h.b16 %v167
    %v701 = vunpack.c.l.b16 %v168
    %v702 = vunpack.c.h.b16 %v168
    %v703 = vunpack.c.l.b16 %v169
    %v704 = vunpack.c.h.b16 %v169
    %v705 = vunpack.c.l.b16 %v170
    %v706 = vunpack.c.h.b16 %v170
    %v707 = vunpack.c.l.b16 %v171
    %v708 = vunpack.c.h.b16 %v171
    %v709 = vunpack.c.l.b16 %v172
    %v710 = vunpack.c.h.b16 %v172
    %v711 = vunpack.c.l.b16 %v173
    %v712 = vunpack.c.h.b16 %v173
    %v713 = vunpack.c.l.b16 %v174
    %v714 = vunpack.c.h.b16 %v174
    %v715 = vunpack.c.l.b16 %v175
    %v716 = vunpack.c.h.b16 %v175
    %v717 = vunpack.c.l.b16 %v176
    %v718 = vunpack.c.h.b16 %v176
    %v719 = vunpack.c.l.b16 %v177
    %v720 = vunpack.c.h.b16 %v177
    %v721 = vpack.c.b16 %v659, %v657
    %v722 = vpack.c.b16 %v660, %v658
    %v723 = vpack.c.b16 %v663, %v661
    %v724 = vpack.c.b16 %v664, %v662
    %v725 = vpack.c.b16 %v667, %v665
    %v726 = vpack.c.b16 %v668, %v666
    %v727 = vpack.c.b16 %v671, %v669
    %v728 = vpack.c.b16 %v672, %v670
    %v729 = vpack.c.b16 %v675, %v673
    %v730 = vpack.c.b16 %v676, %v674
    %v731 = vpack.c.b16 %v679, %v677
    %v732 = vpack.c.b16 %v680, %v678
    %v733 = vpack.c.b16 %v683, %v681
    %v734 = vpack.c.b16 %v684, %v682
    %v735 = vpack.c.b16 %v687, %v685
    %v736 = vpack.c.b16 %v688, %v686
    %v737 = vpack.c.b16 %v691, %v689
    %v738 = vpack.c.b16 %v692, %v690
    %v739 = vpack.c.b16 %v695, %v693
    %v740 = vpack.c.b16 %v696, %v694
    %v741 = vpack.c.b16 %v699, %v697
    %v742 = vpack.c.b16 %v700, %v698
    %v743 = vpack.c.b16 %v703, %v701
    %v744 = vpack.c.b16 %v704, %v702
    %v745 = vpack.c.b16 %v707, %v705
    %v746 = vpack.c.b16 %v708, %v706
    %v747 = vpack.c.b16 %v711, %v709
    %v748 = vpack.c.b16 %v712, %v710
    %v749 = vpack.c.b16 %v715, %v713
    %v750 = vpack.c.b16 %v716, %v714
    %v751 = vpack.c.b16 %v719, %v717
    %v752 = vpack.c.b16 %v720, %v718
    %785 = vmatprep.subr.bf16.mxu0 %v722
    %786 = vmatpush1.bf16.msra.mxu0 %v721
    %787 = vmatprep.subr.bf16.mxu0 %v724
    %788 = vmatpush1.bf16.msra.mxu0 %v723
    %789 = vmatprep.subr.bf16.mxu0 %v726
    %790 = vmatpush1.bf16.msra.mxu0 %v725
    %791 = vmatprep.subr.bf16.mxu0 %v728
    %792 = vmatpush1.bf16.msra.mxu0 %v727
    %793 = vmatprep.subr.bf16.mxu0 %v730
    %794 = vmatpush1.bf16.msra.mxu0 %v729
    %795 = vmatprep.subr.bf16.mxu0 %v732
    %796 = vmatpush1.bf16.msra.mxu0 %v731
    %797 = vmatprep.subr.bf16.mxu0 %v734
    %798 = vmatpush1.bf16.msra.mxu0 %v733
    %799 = vmatprep.subr.bf16.mxu0 %v736
    %800 = vmatpush1.bf16.msra.mxu0 %v735
    %801 = vmatprep.subr.bf16.mxu0 %v738
    %802 = vmatpush1.bf16.msra.mxu0 %v737
    %803 = vmatprep.subr.bf16.mxu0 %v740
    %804 = vmatpush1.bf16.msra.mxu0 %v739
    %805 = vmatprep.subr.bf16.mxu0 %v742
    %806 = vmatpush1.bf16.msra.mxu0 %v741
    %807 = vmatprep.subr.bf16.mxu0 %v744
    %808 = vmatpush1.bf16.msra.mxu0 %v743
    %809 = vmatprep.subr.bf16.mxu0 %v746
    %810 = vmatpush1.bf16.msra.mxu0 %v745
    %811 = vmatprep.subr.bf16.mxu0 %v748
    %812 = vmatpush1.bf16.msra.mxu0 %v747
    %813 = vmatprep.subr.bf16.mxu0 %v750
    %814 = vmatpush1.bf16.msra.mxu0 %v749
    %815 = vmatprep.subr.bf16.mxu0 %v752
    %816 = vmatpush1.bf16.msra.mxu0 %v751
    %817 = vmatprep.mubr.bf16.mxu0 %v616
    %818 = vmatmul.mubr.bf16.gmra.mrb[0].mxu0 %v615
    %v819 = vpop.f32.mrb[0].mxu0
    %v820 = vadd.f32 %v620, %v819
    %v821 = vpop.f32.mrb[0].mxu0
    %v822 = vadd.f32 %v624, %v821
    %v823 = vpop.f32.mrb[0].mxu0
    %v824 = vpop.f32.mrb[0].mxu0
    %825 = vdwg.mxu0
    %v826 = vadd.f32 %v820, %v599
    %v827 = vadd.f32 %v822, %v601
    %828 = vadd.xlane.f32.xlu0 %v826
    %v829 = vpop.xlane.xlu0 %828
    %v830 = vmul.f32 %v826, %v826
    %831 = vadd.xlane.f32.xlu0 %v830
    %v832 = vpop.xlane.xlu0 %831
    %v833 = vmul.f32 %v829, 0.0078125
    %v834 = vmul.f32 %v832, 0.0078125
    %v835 = vmul.f32 %v833, %v833
    %v836 = vsub.f32 %v834, %v835
    %v837 = vadd.f32 %v836, 1e-05
    %v838 = vrsqrt.pop %v837
    %v839 = vlaneseq
    %v840 = vshrl.u32 %v839, 7
    %v841 = vsub.s32 3, %v840
    %v842 = vrot.slane %v79, %v841
    %v843 = vmul.f32 %v842, %v838
    %v844 = vmul.f32 %v826, %v843
    %v845 = vmul.f32 %v833, %v843
    %v846 = vlaneseq
    %v847 = vshrl.u32 %v846, 7
    %v848 = vsub.s32 4, %v847
    %v849 = vrot.slane %v79, %v848
    %v850 = vsub.f32 %v849, %v845
    %v851 = vadd.f32 %v844, %v850
    %852 = vadd.xlane.f32.xlu0 %v827
    %v853 = vpop.xlane.xlu0 %852
    %v854 = vmul.f32 %v827, %v827
    %855 = vadd.xlane.f32.xlu0 %v854
    %v856 = vpop.xlane.xlu0 %855
    %v857 = vmul.f32 %v853, 0.0078125
    %v858 = vmul.f32 %v856, 0.0078125
    %v859 = vmul.f32 %v857, %v857
    %v860 = vsub.f32 %v858, %v859
    %v861 = vadd.f32 %v860, 1e-05
    %v862 = vrsqrt.pop %v861
    %v863 = vlaneseq
    %v864 = vshrl.u32 %v863, 7
    %v865 = vsub.s32 3, %v864
    %v866 = vrot.slane %v80, %v865
    %v867 = vmul.f32 %v866, %v862
    %v868 = vmul.f32 %v827, %v867
    %v869 = vmul.f32 %v857, %v867
    %v870 = vlaneseq
    %v871 = vshrl.u32 %v870, 7
    %v872 = vsub.s32 4, %v871
    %v873 = vrot.slane %v80, %v872
    %v874 = vsub.f32 %v873, %v869
    %v875 = vadd.f32 %v868, %v874
    %s876 = sld [smem:[#allocation2]]
    %v877 = vmul.f32 %v851, %v851
    %878 = vadd.xlane.f32.xlu0 %v877
    %v879 = vpop.xlane.xlu0 %878
    %v880 = vrsqrt.pop %v879
    %v881 = vmin.f32 %v880, 1e+12
    %v882 = vmul.f32 %v875, %v875
    %883 = vadd.xlane.f32.xlu0 %v882
    %v884 = vpop.xlane.xlu0 %883
    %v885 = vrsqrt.pop %v884
    %v886 = vmin.f32 %v885, 1e+12
    %v887 = vmul.f32 %v875, %v886
    %v888 = vpack.c.bf16 %v851, %v851
    %v889 = vpack.c.bf16 %v887, %v887
    %890 = vmatprep.subr.bf16.mxu0 0
    %891 = vmatpush1.bf16.xpose.msra.mxu0 %v889
    %892 = vmatprep.subr.bf16.mxu0 0
    %893 = vmatpush1.bf16.xpose.msra.mxu0 0
    %894 = vmatprep.subr.bf16.mxu0 0
    %895 = vmatpush1.bf16.xpose.msra.mxu0 0
    %896 = vmatprep.subr.bf16.mxu0 0
    %897 = vmatpush1.bf16.xpose.msra.mxu0 0
    %898 = vmatprep.subr.bf16.mxu0 0
    %899 = vmatpush1.bf16.xpose.msra.mxu0 0
    %900 = vmatprep.subr.bf16.mxu0 0
    %901 = vmatpush1.bf16.xpose.msra.mxu0 0
    %902 = vmatprep.subr.bf16.mxu0 0
    %903 = vmatpush1.bf16.xpose.msra.mxu0 0
    %904 = vmatprep.subr.bf16.mxu0 0
    %905 = vmatpush1.bf16.xpose.msra.mxu0 0
    %906 = vmatprep.subr.bf16.mxu0 0
    %907 = vmatpush1.bf16.xpose.msra.mxu0 0
    %908 = vmatprep.subr.bf16.mxu0 0
    %909 = vmatpush1.bf16.xpose.msra.mxu0 0
    %910 = vmatprep.subr.bf16.mxu0 0
    %911 = vmatpush1.bf16.xpose.msra.mxu0 0
    %912 = vmatprep.subr.bf16.mxu0 0
    %913 = vmatpush1.bf16.xpose.msra.mxu0 0
    %914 = vmatprep.subr.bf16.mxu0 0
    %915 = vmatpush1.bf16.xpose.msra.mxu0 0
    %916 = vmatprep.subr.bf16.mxu0 0
    %917 = vmatpush1.bf16.xpose.msra.mxu0 0
    %918 = vmatprep.subr.bf16.mxu0 0
    %919 = vmatpush1.bf16.xpose.msra.mxu0 0
    %920 = vmatprep.subr.bf16.mxu0 0
    %921 = vmatpush1.bf16.xpose.msra.mxu0 0
    %922 = vmatprep.mubr.bf16.mxu0 0
    %923 = vmatmul.mubr.bf16.gmra.mrb[0].mxu0 %v888
    %v924 = vpop.f32.mrb[0].mxu0
    %v925 = vadd.f32 0.0, %v924
    %v926 = vpop.f32.mrb[0].mxu0
    %v927 = vpop.f32.mrb[0].mxu0
    %v928 = vpop.f32.mrb[0].mxu0
    %929 = vdwg.mxu0
    %v930 = vstv %s876
    %v931 = vmul.f32 %v930, 1.442695
    %v932 = vpow.pop %v931
    %s933 = vtos %v932
    %v934 = vstv %s933
    %v935 = vmul.f32 %v881, %v934
    %v936 = vmul.f32 %v925, %v935
    %vm937 = vcmask 64512
    %938 = vst.msk [vmem:[#allocation11] sm:$0xff] %vm937, %v936
    // Predicated region
    $region42: #{tpu_custom_call.1} parent=1 // pred_check
      _
    $region43: #{tpu_custom_call.1} parent=1 // pred_check_branch
      %940 = sbr.rel (0) target = $region45
    $region44: #{tpu_custom_call.1} parent=1 // pred_region
      %s942 = ssub.s32 128, 128
      %943 = vsyncadd [#allocation5], %s942
      %s945 = sshll.u32 [#allocation11], 4
      %s946 = int_to_ptr.vmem [resolvable:$true] %s945
      %948 = dma.vmem_to_hbm [thread:$0]  %s946, 128, %s6, [#allocation5]
    $region45: #{tpu_custom_call.1} parent=1 // pred_fallthru
      _
    // Predicated region
    $region46: #{tpu_custom_call.1} parent=1 // pred_check
      _
    $region47: #{tpu_custom_call.1} parent=1 // pred_check_branch
      %950 = sbr.rel (0) target = $region49
    $region48: #{tpu_custom_call.1} parent=1 // pred_region
      %951 = dma.done [#allocation5], 128
    $region49: #{tpu_custom_call.1} parent=1 // pred_fallthru
      _
    %952 = vsyncpa [#allocation4], 1
    %953 = vsyncpa [#allocation7], 1
    %954 = vsyncpa [#allocation10], 1
    %955 = vsyncpa [#allocation5], 1

</llo_original>
